<compile_context>
chip_gen: v7x
topology: tpu7x:2x2x1
jax: 0.10.0
libtpu: 0.0.40
codegen_flags: <defaults>
</compile_context>

<pallas_src>
import numpy as np
import jax
import jax.numpy as jnp
from jax.experimental import pallas as pl
from jax.experimental.pallas import tpu as pltpu


def _round_up(n: int, m: int) -> int:
    return ((n + m - 1) // m) * m


def _drop_path_kernel(scale_ref, x_ref, o_ref):
    # scale_ref: (R, 1) per-row scale (0 or 1/keep_prob); x_ref/o_ref: (R, TILE_F)
    o_ref[...] = (x_ref[...] * scale_ref[...]).astype(o_ref.dtype)


def drop_path_pallas(x, drop_prob: float = 0.0, training: bool = False, seed: int = 0):
    """Pallas equivalent of timm/rwightman drop_path()."""
    if drop_prob == 0.0 or not training:
        return x

    keep_prob = 1.0 - drop_prob
    B = int(x.shape[0])
    F = int(np.prod(x.shape[1:])) if x.ndim > 1 else 1

    # Per-sample Bernoulli(keep_prob) mask, matching torch:
    #   random_tensor = floor(keep_prob + U[0,1))  in {0, 1}
    key = jax.random.PRNGKey(seed)
    u = jax.random.uniform(key, (B, 1), dtype=jnp.float32)
    mask = jnp.floor(keep_prob + u)                       # (B, 1) in {0., 1.}
    scale = (mask * (1.0 / keep_prob)).astype(x.dtype)    # (B, 1): 0 or 1/keep_prob

    xf = x.reshape(B, F)

    # Sublane packing: if B < 8, split the feature axis into extra rows so the
    # block fills full 8-sublane vregs; repeat each sample's scale accordingly.
    k = 1
    if B < 8:
        for cand in (2, 4, 8):
            if B * cand >= 8 and F % cand == 0:
                k = cand
                break
    R = B * k
    Fc = F // k
    xr = xf.reshape(R, Fc)
    scale_rows = jnp.repeat(scale, k, axis=0) if k > 1 else scale   # (R, 1)

    # Lane-dense tiling of the feature axis.  TILE_F is a multiple of 128 and
    # sized conservatively so (in + out) x double-buffer fits scoped VMEM on
    # v5e / v6e / v7x.  Pad the column dim so every block is full (no masked
    # partial stores), then strip the padding afterwards.
    TILE_TARGET = 2048
    fc_pad128 = _round_up(Fc, 128)
    tile_f = min(TILE_TARGET, fc_pad128)
    fc_pad = _round_up(Fc, tile_f)
    if fc_pad != Fc:
        xr = jnp.pad(xr, ((0, 0), (0, fc_pad - Fc)))

    grid = (fc_pad // tile_f,)

    out = pl.pallas_call(
        _drop_path_kernel,
        out_shape=jax.ShapeDtypeStruct((R, fc_pad), x.dtype),
        grid=grid,
        in_specs=[
            pl.BlockSpec((R, 1), lambda j: (0, 0)),          # per-row scale (resident)
            pl.BlockSpec((R, tile_f), lambda j: (0, j)),     # x tile
        ],
        out_specs=pl.BlockSpec((R, tile_f), lambda j: (0, j)),
        compiler_params=pltpu.CompilerParams(
            dimension_semantics=("parallel",),               # shard tiles across TCs (v7x)
        ),
    )(scale_rows, xr)

    if fc_pad != Fc:
        out = out[:, :Fc]
    return out.reshape(x.shape)


class DropPath:
    """Mirror of the PyTorch DropPath module (training flag held on the object)."""

    def __init__(self, drop_prob=None):
        self.drop_prob = drop_prob
        self.training = True

    def __call__(self, x, seed: int = 0):
        p = 0.0 if self.drop_prob is None else float(self.drop_prob)
        return drop_path_pallas(x, p, self.training, seed=seed)


if __name__ == "__main__":
    key = jax.random.PRNGKey(0)
    B, C, H, W = 2, 4, 16, 16
    x = jax.random.normal(key, (B, C, H, W), dtype=jnp.float32)

    module = DropPath(drop_prob=0.3)

    # training=True path (the hot Pallas path)
    y = module(x, seed=42)
    y = jax.block_until_ready(y)

    # Sanity check: each sample's output is either all-zeros or x / keep_prob.
    keep_prob = 1.0 - 0.3
    y_np = np.asarray(y)
    x_np = np.asarray(x)
    for b in range(B):
        scaled = x_np[b] / keep_prob
        is_kept = np.allclose(y_np[b], scaled, rtol=1e-5, atol=1e-5)
        is_dropped = np.allclose(y_np[b], 0.0, atol=1e-6)
        assert is_kept or is_dropped, f"sample {b}: not a valid drop-path output"

    # eval mode: identity
    module.training = False
    y_eval = jax.block_until_ready(module(x))
    assert np.allclose(np.asarray(y_eval), x_np)

    print("KERNEL_OK")
</pallas_src>

<mosaic_0001>
module attributes {stable_mosaic.version = 11 : i64} {
  func.func @_drop_path_kernel(%arg0: i32, %arg1: memref<8x1xf32, #tpu.memory_space<vmem>>, %arg2: memref<8x256xf32, #tpu.memory_space<vmem>>, %arg3: memref<8x256xf32, #tpu.memory_space<vmem>>) attributes {dimension_semantics = [#tpu.dimension_semantics<parallel>], iteration_bounds = array<i64: 1>, scalar_prefetch = 0 : i64, scratch_operands = 0 : i64, tpu.core_type = #tpu.core_type<tc>, window_params = [{pipeline_mode = #tpu.pipeline_mode<synchronous>, transform_indices = @transform_0, window_bounds = array<i64: 8, 1>}, {transform_indices = @transform_1, window_bounds = array<i64: 8, 256>}, {transform_indices = @transform_2, window_bounds = array<i64: 8, 256>}]} {
    %c0 = arith.constant 0 : index
    %c0_0 = arith.constant 0 : index
    %0 = vector.load %arg2[%c0, %c0_0] : memref<8x256xf32, #tpu.memory_space<vmem>>, vector<8x256xf32>
    %c0_1 = arith.constant 0 : index
    %c0_2 = arith.constant 0 : index
    %1 = vector.load %arg1[%c0_1, %c0_2] : memref<8x1xf32, #tpu.memory_space<vmem>>, vector<8x1xf32>
    %2 = vector.broadcast %1 : vector<8x1xf32> to vector<8x256xf32>
    %3 = arith.mulf %0, %2 : vector<8x256xf32>
    %c0_3 = arith.constant 0 : index
    %c0_4 = arith.constant 0 : index
    %4 = vector.load %arg3[%c0_3, %c0_4] : memref<8x256xf32, #tpu.memory_space<vmem>>, vector<8x256xf32>
    tpu.vector_store %arg3[%c0_3, %c0_4], %3 {strides = array<i32>} : memref<8x256xf32, #tpu.memory_space<vmem>>, vector<8x256xf32>,
    return
  }
  func.func @transform_0(%arg0: i32) -> (i32, i32) {
    %c0_i32 = arith.constant 0 : i32
    %c0_i32_0 = arith.constant 0 : i32
    %c0_i32_1 = arith.constant 0 : i32
    return %c0_i32, %c0_i32_0 : i32, i32
  }
  func.func @transform_1(%arg0: i32) -> (i32, i32) {
    %c0_i32 = arith.constant 0 : i32
    %c0_i32_0 = arith.constant 0 : i32
    return %c0_i32, %arg0 : i32, i32
  }
  func.func @transform_2(%arg0: i32) -> (i32, i32) {
    %c0_i32 = arith.constant 0 : i32
    %c0_i32_0 = arith.constant 0 : i32
    return %c0_i32, %arg0 : i32, i32
  }
}

</mosaic_0001>

<llo_original>
// kernel: tpu_custom_call.1
$region0: #{tpu_custom_call.1}
  #allocation0 [shape = 'u32[]', space=smem, size = 0x4, offset = 0x4, fixed_abs, tag = 'smem constant byte address 0x4 - core index']
  #allocation1 [shape = 'u32[144,128]{1,0:T(1,128)}', space=vmem, size = 0x12000, scoped, tag = 'internal scratch']
  %s0 = inlined_call_operand.vmem [shape: f32[8,1], index: 0, kind: input, shape index: {}]
  %s1 = inlined_call_operand.hbm [shape: f32[8,256], index: 1, kind: input, shape index: {}]
  %s2 = inlined_call_operand.hbm [shape: f32[8,256], index: 2, kind: output, shape index: {}]
  %s3 = sld [smem:[#allocation0]]
  $region22: #{tpu_custom_call.1} parent=0
    _
  %s5 = ssub.s32 1, %s3
  %s6 = scalar_select 0, %s5, %s3
  $region1: #{tpu_custom_call.1} parent=0
    #allocation2 [shape = 'u8[8192]{0}', space=vmem, size = 0x2000, scoped, tag = 'input window, operand 1, single buffered']
    #allocation3 [shape = 's32[1]{0}', space=sflag, size = 0x4, scoped, tag = 'scoped memory for tpu_custom_call.1']
    #allocation4 [shape = 's32[1]{0}', space=sflag, size = 0x4, scoped, tag = 'scoped memory for tpu_custom_call.1']
    #allocation5 [shape = 'u8[8192]{0}', space=vmem, size = 0x2000, scoped, tag = 'output window, operand 0, single buffered']
    %7 = vsyncpa [#allocation3], 0
    %8 = vsyncpa [#allocation4], 0
    // Predicated region
    $region2: #{tpu_custom_call.1} parent=1 // pred_check
      _
    $region3: #{tpu_custom_call.1} parent=1 // pred_check_branch
      %10 = sbr.rel (0) target = $region5
    $region4: #{tpu_custom_call.1} parent=1 // pred_region
      _
    $region5: #{tpu_custom_call.1} parent=1 // pred_fallthru
      _
    // Predicated region
    $region6: #{tpu_custom_call.1} parent=1 // pred_check
      _
    $region7: #{tpu_custom_call.1} parent=1 // pred_check_branch
      %12 = sbr.rel (0) target = $region9
    $region8: #{tpu_custom_call.1} parent=1 // pred_region
      %s14 = ssub.s32 256, 256
      %15 = vsyncadd [#allocation3], %s14
      %s17 = sshll.u32 [#allocation2], 4
      %s18 = int_to_ptr.vmem [resolvable:$true] %s17
      %20 = dma.hbm_to_vmem [thread:$0]  %s1, 256, %s18, [#allocation3]
    $region9: #{tpu_custom_call.1} parent=1 // pred_fallthru
      _
    // Predicated region
    $region10: #{tpu_custom_call.1} parent=1 // pred_check
      _
    $region11: #{tpu_custom_call.1} parent=1 // pred_check_branch
      %22 = sbr.rel (0) target = $region13
    $region12: #{tpu_custom_call.1} parent=1 // pred_region
      %23 = dma.done [#allocation3], 256
    $region13: #{tpu_custom_call.1} parent=1 // pred_fallthru
      _
    %v24 = vld [vmem:[#allocation2] sm:$0xff]
    %v25 = vld [vmem:[#allocation2 + $0x8] sm:$0xff]
    %v26 = vld [vmem:[%s0] sm:$0xff]
    %28 = vset.pattern.permute.xlu0 0
    %29 = vperm.xlu0 %28, %v26
    %v30 = vpop.permute.xlu0 %29
    %v32 = vmul.f32 %v24, %v30
    %v33 = vmul.f32 %v25, %v30
    %34 = vst [vmem:[#allocation5] sm:$0xff] %v32
    %35 = vst [vmem:[#allocation5 + $0x8] sm:$0xff] %v33
    // Predicated region
    $region14: #{tpu_custom_call.1} parent=1 // pred_check
      _
    $region15: #{tpu_custom_call.1} parent=1 // pred_check_branch
      %37 = sbr.rel (0) target = $region17
    $region16: #{tpu_custom_call.1} parent=1 // pred_region
      %s39 = ssub.s32 256, 256
      %40 = vsyncadd [#allocation4], %s39
      %s42 = sshll.u32 [#allocation5], 4
      %s43 = int_to_ptr.vmem [resolvable:$true] %s42
      %45 = dma.vmem_to_hbm [thread:$0]  %s43, 256, %s2, [#allocation4]
    $region17: #{tpu_custom_call.1} parent=1 // pred_fallthru
      _
    // Predicated region
    $region18: #{tpu_custom_call.1} parent=1 // pred_check
      _
    $region19: #{tpu_custom_call.1} parent=1 // pred_check_branch
      %47 = sbr.rel (0) target = $region21
    $region20: #{tpu_custom_call.1} parent=1 // pred_region
      %48 = dma.done [#allocation4], 256
    $region21: #{tpu_custom_call.1} parent=1 // pred_fallthru
      _
    %49 = vsyncpa [#allocation3], 1
    %50 = vsyncpa [#allocation4], 1

</llo_original>
